<compile_context>
chip_gen: v7x
topology: tpu7x:2x2x1
jax: 0.10.0
libtpu: 0.0.40
codegen_flags: <defaults>
</compile_context>

<pallas_src>
import functools

import jax
import jax.numpy as jnp
from jax.experimental import pallas as pl
from jax.experimental.pallas import tpu as pltpu

EPS = 1e-5          # PyTorch InstanceNorm3d default eps
LEAKINESS = 0.01    # module default negative_slope


# --------------------------------------------------------------------------
# VMEM budgeting helpers (generation-aware, lane/sublane-padding aware)
# --------------------------------------------------------------------------
def _round_up(x, m):
    return (x + m - 1) // m * m


def _padded_bytes(shape, dtype):
    """Approx VMEM footprint: minor dim padded to 128 lanes, second-minor to
    the dtype's sublane tile."""
    itemsize = jnp.dtype(dtype).itemsize
    sub = {4: 8, 2: 16, 1: 32}.get(itemsize, 8)
    if len(shape) == 1:
        return _round_up(shape[0], 128) * itemsize * sub
    lead = 1
    for d in shape[:-2]:
        lead *= d
    return lead * _round_up(shape[-2], sub) * _round_up(shape[-1], 128) * itemsize


def _vmem_budgets():
    """(per-step working-set budget, vmem_limit_bytes for CompilerParams)."""
    try:
        cap = getattr(pltpu.get_tpu_info(), "vmem_capacity_bytes", 128 << 20)
    except Exception:
        cap = 128 << 20
    budget = min(int(cap * 0.35), 48 << 20)     # v6e ~45 MiB, v7x ~22 MiB
    limit = min(int(cap * 0.80), 112 << 20)
    return budget, limit


def _conv_vmem_estimate(TD, H, W, Cin, Cout, in_dtype, out_dtype, fuse_skip):
    HW = H * W
    NR = (TD + 2) * HW
    M = TD * HW
    t = 0
    # Double-buffered pipeline blocks.
    t += 2 * _padded_bytes((TD, H, W, Cin), in_dtype)          # centre
    t += 4 * _padded_bytes((1, H, W, Cin), in_dtype)           # depth halo planes
    t += 2 * _padded_bytes((TD, HW * Cout), out_dtype)         # lane-dense output
    if fuse_skip:
        t += 2 * _padded_bytes((TD, HW * Cout), jnp.float32)
    t += 2 * _padded_bytes((9 * Cin, 3 * Cout), jnp.bfloat16)  # packed weights
    # Scratch.
    t += _padded_bytes((TD + 2, H + 2, W + 2, Cin), jnp.bfloat16)   # halo slab
    t += _padded_bytes((NR, 9 * Cin), jnp.bfloat16)                 # im2col
    t += _padded_bytes((NR, 3 * Cout), jnp.float32)                 # matmul result
    # Compiler temporaries (normalized centre, combine result, dense slab).
    t += _padded_bytes((TD, H, W, Cin), jnp.float32)
    t += 2 * _padded_bytes((M, Cout), jnp.float32)
    t += _padded_bytes((TD, HW * Cout), jnp.float32)
    return t


def _td_candidates(D, out_dtype):
    sub = 16 if jnp.dtype(out_dtype).itemsize == 2 else 8
    return [d for d in range(1, D + 1)
            if D % d == 0 and (d % sub == 0 or d == D)]


def _pick_td(D, H, W, Cin, Cout, in_dtype, out_dtype, fuse_skip, budget):
    cands = _td_candidates(D, out_dtype)
    fit = [d for d in cands
           if _conv_vmem_estimate(d, H, W, Cin, Cout, in_dtype, out_dtype,
                                  fuse_skip) <= budget]
    return max(fit) if fit else min(cands)


def _dense_groups(S, C):
    """How many consecutive spatial voxels to pack into the lane dim."""
    if C >= 128 or 128 % C != 0:
        return 1
    k = 128 // C
    while k > 1 and S % k:
        k //= 2
    return max(k, 1)


def _pick_ts(S2, L, in_dtype, budget):
    cands = [t for t in range(1, S2 + 1)
             if S2 % t == 0 and (t % 8 == 0 or t == S2)]
    fit = [t for t in cands
           if 2 * _padded_bytes((t, L), in_dtype) + (1 << 20) <= budget]
    return max(fit) if fit else min(cands)


# --------------------------------------------------------------------------
# Kernel 1: lane-dense per-(sample, channel) sum / sum-of-squares.
# x is presented as (N, S2, L) with L = k*C (k consecutive voxels packed into
# lanes); the (1, 2, L) output block accumulates across the spatial tile axis.
# --------------------------------------------------------------------------
def _stats_kernel(x_ref, o_ref):
    @pl.when(pl.program_id(1) == 0)
    def _():
        o_ref[...] = jnp.zeros_like(o_ref)

    x = x_ref[0].astype(jnp.float32)                  # (TS, L)
    s = jnp.sum(x, axis=0, keepdims=True)             # (1, L)
    ss = jnp.sum(x * x, axis=0, keepdims=True)        # (1, L)
    o_ref[...] += jnp.concatenate([s, ss], axis=0)[None]


def spatial_stats(x_ndhwc, ts=None):
    N, D, H, W, C = x_ndhwc.shape
    S = D * H * W
    k = _dense_groups(S, C)
    L = k * C
    S2 = S // k
    budget, vmem_limit = _vmem_budgets()
    TS = ts if ts is not None else _pick_ts(S2, L, x_ndhwc.dtype,
                                            min(budget, 8 << 20))
    assert S2 % TS == 0 and (TS % 8 == 0 or TS == S2), (S2, TS)

    x2 = x_ndhwc.reshape(N, S2, L)                    # free row-major reshape
    stats = pl.pallas_call(
        _stats_kernel,
        out_shape=jax.ShapeDtypeStruct((N, 2, L), jnp.float32),
        grid_spec=pltpu.PrefetchScalarGridSpec(
            num_scalar_prefetch=0,
            grid=(N, S2 // TS),
            in_specs=[pl.BlockSpec((1, TS, L), lambda n, t: (n, t, 0))],
            out_specs=pl.BlockSpec((1, 2, L), lambda n, t: (n, 0, 0)),
        ),
        compiler_params=pltpu.CompilerParams(
            dimension_semantics=("parallel", "arbitrary"),
            vmem_limit_bytes=vmem_limit),
    )(x2)
    # Fold the k lane groups back to per-channel sums: (N, 2, C).
    return stats.reshape(N, 2, k, C).sum(axis=2)


def _affine_from_stats(stats, S, gamma, beta, eps=EPS):
    """stats: (N, 2, C) -> per-(n, c) scale/shift so norm(x) = a*x + b."""
    mean = stats[:, 0, :] / S
    var = jnp.maximum(stats[:, 1, :] / S - mean * mean, 0.0)
    rstd = jax.lax.rsqrt(var + eps)
    a = gamma[None, :] * rstd
    b = beta[None, :] - mean * a
    return a[:, None, :], b[:, None, :]               # (N, 1, C) each


# --------------------------------------------------------------------------
# Kernel 2: fused InstanceNorm + LeakyReLU + 3x3x3 Conv (+ bias, + residual,
# + optional next-stage stats).  Grid (N, NO, NI) over depth tiles of size TD;
# the 1-voxel halo is assembled in a bf16 VMEM slab.
# --------------------------------------------------------------------------
def _fused_kernel(*refs, TD, H, W, Cin, Cout, NI, nDT, leakiness,
                  fuse_skip, emit_stats):
    it = iter(refs)
    xc_ref = next(it)
    xp_ref = next(it)
    xn_ref = next(it)
    a_ref = next(it)
    b_ref = next(it)
    w_ref = next(it)
    bias_ref = next(it)
    skip_ref = next(it) if fuse_skip else None
    o_ref = next(it)
    stats_ref = next(it) if emit_stats else None
    xs_ref = next(it)
    col_ref = next(it)
    res_ref = next(it)

    f32 = jnp.float32
    HW = H * W
    M = TD * HW
    NR = (TD + 2) * HW
    dt = pl.program_id(1) * NI + pl.program_id(2)     # global depth-tile index

    a = a_ref[0].astype(f32)                          # (1, Cin)
    b = b_ref[0].astype(f32)                          # (1, Cin)

    def norm_act(v):                                  # raw input -> normalized
        y = v.astype(f32) * a + b
        return jnp.where(y >= 0.0, y, leakiness * y).astype(xs_ref.dtype)

    # H/W halo faces of the padded slab are always zero.
    xs_ref[:, 0:1, :, :] = jnp.zeros((TD + 2, 1, W + 2, Cin), xs_ref.dtype)
    xs_ref[:, H + 1:H + 2, :, :] = jnp.zeros((TD + 2, 1, W + 2, Cin), xs_ref.dtype)
    xs_ref[:, :, 0:1, :] = jnp.zeros((TD + 2, H + 2, 1, Cin), xs_ref.dtype)
    xs_ref[:, :, W + 1:W + 2, :] = jnp.zeros((TD + 2, H + 2, 1, Cin), xs_ref.dtype)

    # Centre planes: InstanceNorm + LeakyReLU fused into the slab fill.
    xs_ref[1:TD + 1, 1:H + 1, 1:W + 1, :] = norm_act(xc_ref[0])

    # Depth-halo planes: boundary tiles store zeros and skip the norm compute.
    @pl.when(dt > 0)
    def _():
        xs_ref[0, 1:H + 1, 1:W + 1, :] = norm_act(xp_ref[0, 0])

    @pl.when(dt == 0)
    def _():
        xs_ref[0, 1:H + 1, 1:W + 1, :] = jnp.zeros((H, W, Cin), xs_ref.dtype)

    @pl.when(dt < nDT - 1)
    def _():
        xs_ref[TD + 1, 1:H + 1, 1:W + 1, :] = norm_act(xn_ref[0, 0])

    @pl.when(dt == nDT - 1)
    def _():
        xs_ref[TD + 1, 1:H + 1, 1:W + 1, :] = jnp.zeros((H, W, Cin), xs_ref.dtype)

    # im2col built ONCE over the padded depth range: 9 (kh, kw) column writes.
    for kh in range(3):
        for kw in range(3):
            j = kh * 3 + kw
            patch = xs_ref[:, kh:kh + H, kw:kw + W, :]        # (TD+2, H, W, Cin)
            col_ref[:, j * Cin:(j + 1) * Cin] = patch.reshape(NR, Cin)

    # One MXU contraction against kd-packed weights: (NR, 9Cin) x (9Cin, 3Cout).
    res_ref[...] = jnp.dot(col_ref[...], w_ref[...],
                           preferred_element_type=jnp.float32)

    # Combine the 3 kd column groups with depth-shifted row offsets (VPU adds).
    out = (res_ref[0 * HW:0 * HW + M, 0 * Cout:1 * Cout]
           + res_ref[1 * HW:1 * HW + M, 1 * Cout:2 * Cout]
           + res_ref[2 * HW:2 * HW + M, 2 * Cout:3 * Cout])
    out = out + bias_ref[...].astype(f32)             # (M, Cout) + (1, Cout)

    if emit_stats:
        # Next-stage InstanceNorm statistics from the f32 accumulator.
        @pl.when(pl.program_id(2) == 0)
        def _():
            stats_ref[...] = jnp.zeros_like(stats_ref)
        s = jnp.sum(out, axis=0, keepdims=True)       # (1, Cout)
        ss = jnp.sum(out * out, axis=0, keepdims=True)
        stats_ref[...] += jnp.concatenate([s, ss], axis=0)[None, None]

    # Lane-dense epilogue: (M, Cout) -> (TD, H*W*Cout) slab, unmasked stores.
    dense = out.reshape(TD, HW * Cout)
    if fuse_skip:
        dense = dense + skip_ref[0].astype(f32)
    o_ref[0] = dense.astype(o_ref.dtype)


def fused_norm_lrelu_conv(x_ndhwc, a, b, w_oi333, bias, leakiness,
                          emit_stats=False, skip_dense=None, out_dtype=None,
                          td=None):
    """LeakyReLU(InstanceNorm(x)) -> Conv3d(k=3, s=1, p=1) [+ skip].

    Returns the conv output lane-dense as (N, D, H*W*Cout); with
    emit_stats=True also returns per-(n, c) sum / sum-of-squares (N, 2, Cout).
    """
    N, D, H, W, Cin = x_ndhwc.shape
    Cout = w_oi333.shape[0]
    assert w_oi333.shape[1] == Cin, (w_oi333.shape, Cin)
    HW = H * W
    fuse_skip = skip_dense is not None
    out_dtype = x_ndhwc.dtype if out_dtype is None else out_dtype

    budget, vmem_limit = _vmem_budgets()
    TD = td if td is not None else _pick_td(
        D, H, W, Cin, Cout, x_ndhwc.dtype, out_dtype, fuse_skip, budget)
    sub = 16 if jnp.dtype(out_dtype).itemsize == 2 else 8
    assert D % TD == 0 and (TD % sub == 0 or TD == D), (D, TD, out_dtype)
    nDT = D // TD
    # Depth-tile split (outer "parallel" x inner "arbitrary") so both v7x
    # TensorCores get work even when N == 1 and stats accumulate inner-most.
    NO = 2 if (emit_stats and nDT % 2 == 0 and nDT >= 2) else 1
    NI = nDT // NO

    # Weights packed (kh, kw, ci) x (kd, co) -> one (9*Cin, 3*Cout) bf16 operand.
    w_k = (jnp.transpose(w_oi333, (3, 4, 1, 2, 0))
           .reshape(9 * Cin, 3 * Cout).astype(jnp.bfloat16))
    bias2 = bias.reshape(1, Cout).astype(jnp.float32)

    kernel = functools.partial(
        _fused_kernel, TD=TD, H=H, W=W, Cin=Cin, Cout=Cout, NI=NI, nDT=nDT,
        leakiness=leakiness, fuse_skip=fuse_skip, emit_stats=emit_stats)

    def t_of(o, i):
        return o * NI + i

    in_specs = [
        pl.BlockSpec((1, TD, H, W, Cin),
                     lambda n, o, i: (n, t_of(o, i), 0, 0, 0)),
        pl.BlockSpec((1, 1, H, W, Cin),
                     lambda n, o, i: (n, jnp.maximum(t_of(o, i) * TD - 1, 0),
                                      0, 0, 0)),
        pl.BlockSpec((1, 1, H, W, Cin),
                     lambda n, o, i: (n, jnp.minimum(t_of(o, i) * TD + TD, D - 1),
                                      0, 0, 0)),
        pl.BlockSpec((1, 1, Cin), lambda n, o, i: (n, 0, 0)),
        pl.BlockSpec((1, 1, Cin), lambda n, o, i: (n, 0, 0)),
        pl.BlockSpec((9 * Cin, 3 * Cout), lambda n, o, i: (0, 0)),
        pl.BlockSpec((1, Cout), lambda n, o, i: (0, 0)),
    ]
    inputs = [x_ndhwc, x_ndhwc, x_ndhwc,
              a.astype(jnp.float32), b.astype(jnp.float32), w_k, bias2]
    if fuse_skip:
        in_specs.append(pl.BlockSpec((1, TD, HW * Cout),
                                     lambda n, o, i: (n, t_of(o, i), 0)))
        inputs.append(skip_dense)

    o_spec = pl.BlockSpec((1, TD, HW * Cout), lambda n, o, i: (n, t_of(o, i), 0))
    if emit_stats:
        out_shape = (jax.ShapeDtypeStruct((N, D, HW * Cout), out_dtype),
                     jax.ShapeDtypeStruct((N, NO, 2, Cout), jnp.float32))
        out_specs = (o_spec,
                     pl.BlockSpec((1, 1, 2, Cout), lambda n, o, i: (n, o, 0, 0)))
        dim_sem = ("parallel", "parallel", "arbitrary")
    else:
        out_shape = jax.ShapeDtypeStruct((N, D, HW * Cout), out_dtype)
        out_specs = o_spec
        dim_sem = ("parallel", "parallel", "parallel")

    NR = (TD + 2) * HW
    scratch = [pltpu.VMEM((TD + 2, H + 2, W + 2, Cin), jnp.bfloat16),  # halo slab
               pltpu.VMEM((NR, 9 * Cin), jnp.bfloat16),                # im2col
               pltpu.VMEM((NR, 3 * Cout), jnp.float32)]                # matmul res

    outs = pl.pallas_call(
        kernel,
        out_shape=out_shape,
        grid_spec=pltpu.PrefetchScalarGridSpec(
            num_scalar_prefetch=0,
            grid=(N, NO, NI),
            in_specs=in_specs,
            out_specs=out_specs,
            scratch_shapes=scratch,
        ),
        compiler_params=pltpu.CompilerParams(
            dimension_semantics=dim_sem,
            vmem_limit_bytes=vmem_limit),
    )(*inputs)

    if emit_stats:
        y_dense, stats = outs
        return y_dense, stats.sum(axis=1)             # fold outer split: (N,2,Cout)
    return outs


# --------------------------------------------------------------------------
# Parameter init (matches the shapes nn.Module.__init__ creates)
# --------------------------------------------------------------------------
def init_params(key, channels):
    k0, k1, k2, k3 = jax.random.split(key, 4)
    fan_in = channels * 27
    bound = 1.0 / (fan_in ** 0.5)
    return {
        "in0_gamma": jnp.ones((channels,), jnp.float32),
        "in0_beta": jnp.zeros((channels,), jnp.float32),
        "in1_gamma": jnp.ones((channels,), jnp.float32),
        "in1_beta": jnp.zeros((channels,), jnp.float32),
        "conv0_w": jax.random.uniform(k0, (channels, channels, 3, 3, 3),
                                      jnp.float32, -bound, bound),
        "conv0_b": jax.random.uniform(k1, (channels,), jnp.float32, -bound, bound),
        "conv1_w": jax.random.uniform(k2, (channels, channels, 3, 3, 3),
                                      jnp.float32, -bound, bound),
        "conv1_b": jax.random.uniform(k3, (channels,), jnp.float32, -bound, bound),
    }


# --------------------------------------------------------------------------
# Forward:  in0 -> lrelu -> conv0 -> (dropout) -> in1 -> lrelu -> conv1 [+skip]
# --------------------------------------------------------------------------
def encoding_module_forward(x_ncdhw, params, leakiness=LEAKINESS, res=False,
                            td=None, ts=None):
    N, C, D, H, W = x_ncdhw.shape
    S = D * H * W
    HW = H * W
    x = jnp.transpose(x_ncdhw, (0, 2, 3, 4, 1))       # NCDHW -> NDHWC

    # Stage 0: lane-dense stats over x, then fused norm+lrelu+conv0
    # (emits stage-1 stats from its f32 accumulator; y0 stored in bf16).
    s0 = spatial_stats(x, ts=ts)
    a0, b0 = _affine_from_stats(s0, S, params["in0_gamma"], params["in0_beta"])
    y0_dense, s1 = fused_norm_lrelu_conv(
        x, a0, b0, params["conv0_w"], params["conv0_b"], leakiness,
        emit_stats=True, out_dtype=jnp.bfloat16, td=td)
    # TODO(synk): Dropout3d(0.3) -> identity (eval semantics).

    # Stage 1: fused norm+lrelu+conv1, residual add fused into the dense epilogue.
    y0 = y0_dense.reshape(N, D, H, W, C)              # free row-major reshape
    a1, b1 = _affine_from_stats(s1, S, params["in1_gamma"], params["in1_beta"])
    skip_dense = x.reshape(N, D, HW * C) if res else None
    y1_dense = fused_norm_lrelu_conv(
        y0, a1, b1, params["conv1_w"], params["conv1_b"], leakiness,
        emit_stats=False, skip_dense=skip_dense, out_dtype=x.dtype, td=td)
    y1 = y1_dense.reshape(N, D, H, W, C)
    return jnp.transpose(y1, (0, 4, 1, 2, 3))         # NDHWC -> NCDHW


# --------------------------------------------------------------------------
# Pure-JAX reference (same math, XLA ops, HIGHEST precision) for sanity check.
# --------------------------------------------------------------------------
def _ref_forward(x_ncdhw, params, leakiness=LEAKINESS, res=False):
    def inorm_lrelu(x, g, b):          # x: NDHWC
        mean = jnp.mean(x, axis=(1, 2, 3), keepdims=True)
        var = jnp.mean((x - mean) ** 2, axis=(1, 2, 3), keepdims=True)
        y = (x - mean) * jax.lax.rsqrt(var + EPS) * g + b
        return jnp.where(y >= 0, y, leakiness * y)

    def conv(x, w, b):                 # x: NDHWC, w: [Cout,Cin,3,3,3]
        w_dhwio = jnp.transpose(w, (2, 3, 4, 1, 0))
        y = jax.lax.conv_general_dilated(
            x, w_dhwio, window_strides=(1, 1, 1), padding="SAME",
            dimension_numbers=("NDHWC", "DHWIO", "NDHWC"),
            precision=jax.lax.Precision.HIGHEST)
        return y + b

    x_in = jnp.transpose(x_ncdhw, (0, 2, 3, 4, 1))
    x = inorm_lrelu(x_in, params["in0_gamma"], params["in0_beta"])
    x = conv(x, params["conv0_w"], params["conv0_b"])
    x = inorm_lrelu(x, params["in1_gamma"], params["in1_beta"])
    x = conv(x, params["conv1_w"], params["conv1_b"])
    if res:
        x = x + x_in
    return jnp.transpose(x, (0, 4, 1, 2, 3))


if __name__ == "__main__":
    key = jax.random.PRNGKey(0)
    k_x, k_p = jax.random.split(key)

    # Small NCDHW input (C = output_channels of the module).
    N, C, D, H, W = 2, 8, 64, 8, 8
    x = jax.random.normal(k_x, (N, C, D, H, W), jnp.float32)
    params = init_params(k_p, C)

    # Default tiling, explicit small tiles (exercises depth halos, the inner
    # "arbitrary" stats accumulation and the outer depth split), and residual.
    configs = [dict(res=False, td=None, ts=None),
               dict(res=False, td=16, ts=32),
               dict(res=True, td=16, ts=32)]

    for cfg in configs:
        out = jax.block_until_ready(encoding_module_forward(x, params, **cfg))
        assert out.shape == (N, C, D, H, W), out.shape
        ref = jax.block_until_ready(_ref_forward(x, params, res=cfg["res"]))
        if not jnp.allclose(out, ref, rtol=2e-2, atol=2e-2):
            err = jnp.max(jnp.abs(out - ref))
            raise AssertionError(
                f"Pallas output mismatch vs JAX reference for {cfg}, "
                f"max abs err = {err}")

    print("KERNEL_OK")
</pallas_src>

<mosaic_0001>
module attributes {stable_mosaic.version = 11 : i64} {
  func.func @_stats_kernel(%arg0: i32, %arg1: i32, %arg2: memref<1x256x128xf32, #tpu.memory_space<vmem>>, %arg3: memref<1x2x128xf32, #tpu.memory_space<vmem>>) attributes {dimension_semantics = [#tpu.dimension_semantics<parallel>, #tpu.dimension_semantics<arbitrary>], iteration_bounds = array<i64: 2, 1>, scalar_prefetch = 0 : i64, scratch_operands = 0 : i64, tpu.core_type = #tpu.core_type<tc>, window_params = [{transform_indices = @transform_0, window_bounds = array<i64: 1, 256, 128>}, {transform_indices = @transform_1, window_bounds = array<i64: 1, 2, 128>}]} {
    %c0_i32 = arith.constant 0 : i32
    %0 = arith.cmpi eq, %arg1, %c0_i32 : i32
    %1 = arith.extui %0 : i1 to i32
    %c0_i32_0 = arith.constant 0 : i32
    %2 = arith.cmpi ne, %1, %c0_i32_0 : i32
    scf.if %2 {
      %cst_10 = arith.constant 0.000000e+00 : f32
      %15 = vector.broadcast %cst_10 : f32 to vector<1x2x128xf32>
      %c0_11 = arith.constant 0 : index
      %c0_12 = arith.constant 0 : index
      %c0_13 = arith.constant 0 : index
      %16 = vector.load %arg3[%c0_11, %c0_12, %c0_13] : memref<1x2x128xf32, #tpu.memory_space<vmem>>, vector<1x2x128xf32>
      tpu.vector_store %arg3[%c0_11, %c0_12, %c0_13], %15 {strides = array<i32>} : memref<1x2x128xf32, #tpu.memory_space<vmem>>, vector<1x2x128xf32>,
    } else {
    }
    %c0 = arith.constant 0 : index
    %c0_1 = arith.constant 0 : index
    %c0_2 = arith.constant 0 : index
    %3 = vector.load %arg2[%c0, %c0_1, %c0_2] : memref<1x256x128xf32, #tpu.memory_space<vmem>>, vector<1x256x128xf32>
    %4 = vector.shape_cast %3 : vector<1x256x128xf32> to vector<256x128xf32>
    %cst = arith.constant dense<0.000000e+00> : vector<128xf32>
    %5 = vector.multi_reduction <add>, %4, %cst [0] : vector<256x128xf32> to vector<128xf32>
    %6 = vector.shape_cast %5 : vector<128xf32> to vector<1x128xf32>
    %7 = arith.mulf %4, %4 : vector<256x128xf32>
    %cst_3 = arith.constant dense<0.000000e+00> : vector<128xf32>
    %8 = vector.multi_reduction <add>, %7, %cst_3 [0] : vector<256x128xf32> to vector<128xf32>
    %9 = vector.shape_cast %8 : vector<128xf32> to vector<1x128xf32>
    %c0_4 = arith.constant 0 : index
    %c0_5 = arith.constant 0 : index
    %c0_6 = arith.constant 0 : index
    %10 = vector.load %arg3[%c0_4, %c0_5, %c0_6] : memref<1x2x128xf32, #tpu.memory_space<vmem>>, vector<1x2x128xf32>
    %11 = tpu.concatenate %6, %9 in 0 : vector<1x128xf32>, vector<1x128xf32> -> vector<2x128xf32>
    %12 = vector.shape_cast %11 : vector<2x128xf32> to vector<1x2x128xf32>
    %13 = arith.addf %10, %12 : vector<1x2x128xf32>
    %c0_7 = arith.constant 0 : index
    %c0_8 = arith.constant 0 : index
    %c0_9 = arith.constant 0 : index
    %14 = vector.load %arg3[%c0_7, %c0_8, %c0_9] : memref<1x2x128xf32, #tpu.memory_space<vmem>>, vector<1x2x128xf32>
    tpu.vector_store %arg3[%c0_7, %c0_8, %c0_9], %13 {strides = array<i32>} : memref<1x2x128xf32, #tpu.memory_space<vmem>>, vector<1x2x128xf32>,
    return
  }
  func.func @transform_0(%arg0: i32, %arg1: i32) -> (i32, i32, i32) {
    %c0_i32 = arith.constant 0 : i32
    %c0_i32_0 = arith.constant 0 : i32
    return %arg0, %arg1, %c0_i32 : i32, i32, i32
  }
  func.func @transform_1(%arg0: i32, %arg1: i32) -> (i32, i32, i32) {
    %c0_i32 = arith.constant 0 : i32
    %c0_i32_0 = arith.constant 0 : i32
    %c0_i32_1 = arith.constant 0 : i32
    return %arg0, %c0_i32, %c0_i32_0 : i32, i32, i32
  }
}

</mosaic_0001>

<llo_original>
// kernel: tpu_custom_call.1
$region0: #{tpu_custom_call.1}
  #allocation0 [shape = 'u32[]', space=smem, size = 0x4, offset = 0x4, fixed_abs, tag = 'smem constant byte address 0x4 - core index']
  #allocation1 [shape = 'u32[144,128]{1,0:T(1,128)}', space=vmem, size = 0x12000, scoped, tag = 'internal scratch']
  %s0 = inlined_call_operand.hbm [shape: f32[2,256,128], index: 0, kind: input, shape index: {}]
  %s1 = inlined_call_operand.hbm [shape: f32[2,2,128], index: 1, kind: output, shape index: {}]
  %s2 = sld [smem:[#allocation0]]
  $region45: #{tpu_custom_call.1} parent=0
    _
  %s4 = ssub.s32 1, %s2
  %s5 = scalar_select 0, %s4, %s2
  $region1: #{tpu_custom_call.1} parent=0
    #allocation2 [shape = 'u8[262144]{0}', space=vmem, size = 0x40000, scoped, tag = 'input window, operand 0']
    #allocation3 [shape = 's32[2]{0}', space=sflag, size = 0x8, scoped, tag = 'scoped memory for tpu_custom_call.1']
    #allocation4 [shape = 's32[2]{0}', space=sflag, size = 0x8, scoped, tag = 'scoped memory for tpu_custom_call.1']
    #allocation5 [shape = 'u8[2048]{0}', space=vmem, size = 0x800, scoped, tag = 'output window, operand 0']
    %6 = vsyncpa [#allocation3], 0
    %s7 = scalar_lea.sflag [#allocation3], 1
    %8 = vsyncpa %s7, 0
    %9 = vsyncpa [#allocation4], 0
    %s10 = scalar_lea.sflag [#allocation4], 1
    %11 = vsyncpa %s10, 0
    loop: start=0, step=1, limit=4
    $region2: #{tpu_custom_call.1} parent=1 // loop_pre_header
      _
    $region3: #{tpu_custom_call.1} parent=1 // loop_header
      %s13 = sphi 0, %s17
      %p14 = scmp.ge.s32.totalorder %s13, 4
      %s20 = sphi 0, %s32
      %s21 = sphi 0, %s28
      %s22 = sphi 0, %s20
      %s23 = sphi 0, %s21
      %s24 = sphi 0, %s22
      %s25 = sphi 0, %s23
      %s37 = sphi 0, %s39
      %s40 = sphi 0, %s37
      %s41 = sphi 0, %s40
      %s57 = sphi 0, %s41
      %s63 = sphi 0, %s65
      %s66 = sphi 0, %s63
      %s67 = sphi 0, %s66
      %s83 = sphi 0, %s67
    $region4: #{tpu_custom_call.1} parent=1 // loop_header_branch
      %16 = sbr.rel (%p14) target = $region8
    $region5: #{tpu_custom_call.1} parent=1 // loop_body
      %s18 = ssub.s32 %s13, 1
      %s19 = ssub.s32 %s13, 2
      %s26 = sadd.s32 1, %s21
      %p27 = scmp.ge.s32.totalorder %s26, 1
      %s28 = scalar_select %p27, 0, %s26
      %s29 = sadd.s32 1, %s20
      %s30 = scalar_select %p27, %s29, %s20
      %p31 = scmp.ge.s32.totalorder %s30, 2
      %s32 = scalar_select %p31, 0, %s30
      %s33 = ssub.s32 %s20, %s32
      %s34 = ssub.s32 %s21, %s28
      %s35 = sor.u32 %s33, %s34
      %p36 = scmp.eq.s32.totalorder %s35, 0
      %s38 = sadd.s32 %s37, 1
      %s39 = scalar_select %p36, %s37, %s38
      %p42 = pneg %p36
      %p43 = scmp.eq.s32.totalorder %s13, 1
      %p44 = por %p42, %p43
      %p45 = scmp.ne.s32.totalorder %s37, %s40
      %p46 = scmp.eq.s32.totalorder %s13, 0
      %p47 = por %p45, %p46
      %p48 = scmp.ne.s32.totalorder %s37, %s40
      %p49 = scmp.eq.s32.totalorder %s18, 1
      %p50 = por %p48, %p49
      %p51 = scmp.ne.s32.totalorder %s40, %s41
      %p52 = scmp.eq.s32.totalorder %s18, 0
      %p53 = por %p51, %p52
      %p54 = scmp.ne.s32.totalorder %s40, %s41
      %p55 = scmp.eq.s32.totalorder %s19, 1
      %p56 = por %p54, %p55
      %p58 = scmp.ne.s32.totalorder %s41, %s57
      %p59 = scmp.eq.s32.totalorder %s19, 0
      %p60 = por %p58, %p59
      %s61 = ssub.s32 %s20, %s32
      %p62 = scmp.eq.s32.totalorder %s61, 0
      %s64 = sadd.s32 %s63, 1
      %s65 = scalar_select %p62, %s63, %s64
      %p68 = pneg %p62
      %p69 = scmp.eq.s32.totalorder %s13, 1
      %p70 = por %p68, %p69
      %p71 = scmp.ne.s32.totalorder %s63, %s66
      %p72 = scmp.eq.s32.totalorder %s13, 0
      %p73 = por %p71, %p72
      %p74 = scmp.ne.s32.totalorder %s63, %s66
      %p75 = scmp.eq.s32.totalorder %s18, 1
      %p76 = por %p74, %p75
      %p77 = scmp.ne.s32.totalorder %s66, %s67
      %p78 = scmp.eq.s32.totalorder %s18, 0
      %p79 = por %p77, %p78
      %p80 = scmp.ne.s32.totalorder %s66, %s67
      %p81 = scmp.eq.s32.totalorder %s19, 1
      %p82 = por %p80, %p81
      %p84 = scmp.ne.s32.totalorder %s67, %s83
      %p85 = scmp.eq.s32.totalorder %s19, 0
      %p86 = por %p84, %p85
      %p87 = scmp.le.s32.totalorder 1, %s13
      %p88 = scmp.lt.s32.totalorder %s13, 3
      %p89 = pnand %p87, %p88
      %p90 = pneg %p89
      // Predicated region
      $region9: #{tpu_custom_call.1} parent=5 // pred_check
        _
      $region10: #{tpu_custom_call.1} parent=5 // pred_check_branch
        %92 = sbr.rel (%p89) target = $region12
      $region11: #{tpu_custom_call.1} parent=5 // pred_region
        %s93 = ssub.s32 %s13, 1
      $region12: #{tpu_custom_call.1} parent=5 // pred_fallthru
        _
      %p94 = scmp.lt.s32.totalorder %s13, 2
      // Predicated region
      $region13: #{tpu_custom_call.1} parent=5 // pred_check
        %p95 = pneg %p94
      $region14: #{tpu_custom_call.1} parent=5 // pred_check_branch
        %97 = sbr.rel (%p95) target = $region16
      $region15: #{tpu_custom_call.1} parent=5 // pred_region
        // Predicated region
        $region17: #{tpu_custom_call.1} parent=15 // pred_check
          %p98 = pneg %p47
        $region18: #{tpu_custom_call.1} parent=15 // pred_check_branch
          %100 = sbr.rel (%p98) target = $region20
        $region19: #{tpu_custom_call.1} parent=15 // pred_region
          %s101 = sand.u32 %s37, 1
          %s102 = scalar_lea.sflag [#allocation3], %s101
          %s103 = sand.u32 %s37, 1
          %s104 = smul.addr %s103, 256
          %s105 = scalar_lea.vmem [#allocation2], %s104
          %s106 = smul.u32 32, %s21
          %s108 = ssub.s32 4096, 4096
          %109 = vsyncadd %s102, %s108
          %s110 = smul.addr %s20, 32
          %s111 = sadd.s32 %s106, %s110
          %s112 = smul.addr %s111, 128
          %s113 = scalar_lea.hbm %s0, %s112
          %s114 = sshll.u32 %s105, 4
          %s115 = int_to_ptr.vmem [resolvable:$true] %s114
          %120 = dma.hbm_to_vmem [thread:$0]  %s113, 4096, %s115, %s102, 128, 128, 8
        $region20: #{tpu_custom_call.1} parent=15 // pred_fallthru
          _
      $region16: #{tpu_custom_call.1} parent=5 // pred_fallthru
        _
      %p121 = scmp.le.s32.totalorder 1, %s13
      %p122 = scmp.lt.s32.totalorder %s13, 3
      %p123 = pnand %p121, %p122
      %p124 = pneg %p123
      // Predicated region
      $region21: #{tpu_custom_call.1} parent=5 // pred_check
        _
      $region22: #{tpu_custom_call.1} parent=5 // pred_check_branch
        %126 = sbr.rel (%p123) target = $region24
      $region23: #{tpu_custom_call.1} parent=5 // pred_region
        %s127 = ssub.s32 %s13, 1
        %s128 = sand.u32 %s40, 1
        %s129 = scalar_lea.sflag [#allocation3], %s128
        %s130 = sand.u32 %s40, 1
        %s131 = smul.addr %s130, 256
        %s132 = scalar_lea.vmem [#allocation2], %s131
        // Predicated region
        $region25: #{tpu_custom_call.1} parent=23 // pred_check
          %p133 = pneg %p53
        $region26: #{tpu_custom_call.1} parent=23 // pred_check_branch
          %135 = sbr.rel (%p133) target = $region28
        $region27: #{tpu_custom_call.1} parent=23 // pred_region
          %136 = dma.done %s129, 4096
        $region28: #{tpu_custom_call.1} parent=23 // pred_fallthru
          _
        %s137 = sand.u32 %s40, 1
        %s138 = scalar_lea.sflag [#allocation3], %s137
        %s139 = sand.u32 %s40, 1
        %s140 = smul.addr %s139, 256
        %s141 = scalar_lea.vmem [#allocation2], %s140
        %p142 = pneg %p53
        %p143 = pneg %p50
        %p144 = pneg %p79
        %p145 = pneg %p76
        %s146 = sand.u32 %s66, 1
        %s147 = scalar_lea.sflag [#allocation4], %s146
        %s148 = sand.u32 %s66, 1
        %s149 = smul.addr %s148, 2
        %s150 = scalar_lea.vmem [#allocation5], %s149
        %s151 = smul.u32 32, %s23
        %p152 = scmp.eq.s32.totalorder %s23, 0
        // Predicated region
        $region29: #{tpu_custom_call.1} parent=23 // pred_check
          %p153 = pneg %p152
        $region30: #{tpu_custom_call.1} parent=23 // pred_check_branch
          %155 = sbr.rel (%p153) target = $region32
        $region31: #{tpu_custom_call.1} parent=23 // pred_region
          %156 = vst [vmem:[%s150] sm:$0x3] 0.0
        $region32: #{tpu_custom_call.1} parent=23 // pred_fallthru
          _
        %v157 = vld [vmem:[%s132] sm:$0xff]
        %v158 = vld [vmem:[%s132 + $0x8] sm:$0xff]
        %v159 = vld [vmem:[%s132 + $0x10] sm:$0xff]
        %v160 = vld [vmem:[%s132 + $0x18] sm:$0xff]
        %v161 = vld [vmem:[%s132 + $0x20] sm:$0xff]
        %v162 = vld [vmem:[%s132 + $0x28] sm:$0xff]
        %v163 = vld [vmem:[%s132 + $0x30] sm:$0xff]
        %v164 = vld [vmem:[%s132 + $0x38] sm:$0xff]
        %v165 = vld [vmem:[%s132 + $0x40] sm:$0xff]
        %v166 = vld [vmem:[%s132 + $0x48] sm:$0xff]
        %v167 = vld [vmem:[%s132 + $0x50] sm:$0xff]
        %v168 = vld [vmem:[%s132 + $0x58] sm:$0xff]
        %v169 = vld [vmem:[%s132 + $0x60] sm:$0xff]
        %v170 = vld [vmem:[%s132 + $0x68] sm:$0xff]
        %v171 = vld [vmem:[%s132 + $0x70] sm:$0xff]
        %v172 = vld [vmem:[%s132 + $0x78] sm:$0xff]
        %v173 = vld [vmem:[%s132 + $0x80] sm:$0xff]
        %v174 = vld [vmem:[%s132 + $0x88] sm:$0xff]
        %v175 = vld [vmem:[%s132 + $0x90] sm:$0xff]
        %v176 = vld [vmem:[%s132 + $0x98] sm:$0xff]
        %v177 = vld [vmem:[%s132 + $0xa0] sm:$0xff]
        %v178 = vld [vmem:[%s132 + $0xa8] sm:$0xff]
        %v179 = vld [vmem:[%s132 + $0xb0] sm:$0xff]
        %v180 = vld [vmem:[%s132 + $0xb8] sm:$0xff]
        %v181 = vld [vmem:[%s132 + $0xc0] sm:$0xff]
        %v182 = vld [vmem:[%s132 + $0xc8] sm:$0xff]
        %v183 = vld [vmem:[%s132 + $0xd0] sm:$0xff]
        %v184 = vld [vmem:[%s132 + $0xd8] sm:$0xff]
        %v185 = vld [vmem:[%s132 + $0xe0] sm:$0xff]
        %v186 = vld [vmem:[%s132 + $0xe8] sm:$0xff]
        %v187 = vld [vmem:[%s132 + $0xf0] sm:$0xff]
        %v188 = vld [vmem:[%s132 + $0xf8] sm:$0xff]
        %v189 = vadd.f32 %v157, %v158
        %v190 = vadd.f32 %v189, %v159
        %v191 = vadd.f32 %v190, %v160
        %v192 = vadd.f32 %v191, %v161
        %v193 = vadd.f32 %v192, %v162
        %v194 = vadd.f32 %v193, %v163
        %v195 = vadd.f32 %v194, %v164
        %v196 = vadd.f32 %v195, %v165
        %v197 = vadd.f32 %v196, %v166
        %v198 = vadd.f32 %v197, %v167
        %v199 = vadd.f32 %v198, %v168
        %v200 = vadd.f32 %v199, %v169
        %v201 = vadd.f32 %v200, %v170
        %v202 = vadd.f32 %v201, %v171
        %v203 = vadd.f32 %v202, %v172
        %v204 = vadd.f32 %v203, %v173
        %v205 = vadd.f32 %v204, %v174
        %v206 = vadd.f32 %v205, %v175
        %v207 = vadd.f32 %v206, %v176
        %v208 = vadd.f32 %v207, %v177
        %v209 = vadd.f32 %v208, %v178
        %v210 = vadd.f32 %v209, %v179
        %v211 = vadd.f32 %v210, %v180
        %v212 = vadd.f32 %v211, %v181
        %v213 = vadd.f32 %v212, %v182
        %v214 = vadd.f32 %v213, %v183
        %v215 = vadd.f32 %v214, %v184
        %v216 = vadd.f32 %v215, %v185
        %v217 = vadd.f32 %v216, %v186
        %v218 = vadd.f32 %v217, %v187
        %v219 = vadd.f32 %v218, %v188
        %v220 = vrot.slane %v219, 4
        %v221 = vadd.f32 %v219, %v220
        %v222 = vrot.slane %v221, 2
        %v223 = vadd.f32 %v221, %v222
        %v224 = vrot.slane %v223, 1
        %v225 = vadd.f32 %v223, %v224
        %v226 = vmul.f32 %v157, %v157
        %v227 = vmul.f32 %v158, %v158
        %v228 = vmul.f32 %v159, %v159
        %v229 = vmul.f32 %v160, %v160
        %v230 = vmul.f32 %v161, %v161
        %v231 = vmul.f32 %v162, %v162
        %v232 = vmul.f32 %v163, %v163
        %v233 = vmul.f32 %v164, %v164
        %v234 = vmul.f32 %v165, %v165
        %v235 = vmul.f32 %v166, %v166
        %v236 = vmul.f32 %v167, %v167
        %v237 = vmul.f32 %v168, %v168
        %v238 = vmul.f32 %v169, %v169
        %v239 = vmul.f32 %v170, %v170
        %v240 = vmul.f32 %v171, %v171
        %v241 = vmul.f32 %v172, %v172
        %v242 = vmul.f32 %v173, %v173
        %v243 = vmul.f32 %v174, %v174
        %v244 = vmul.f32 %v175, %v175
        %v245 = vmul.f32 %v176, %v176
        %v246 = vmul.f32 %v177, %v177
        %v247 = vmul.f32 %v178, %v178
        %v248 = vmul.f32 %v179, %v179
        %v249 = vmul.f32 %v180, %v180
        %v250 = vmul.f32 %v181, %v181
        %v251 = vmul.f32 %v182, %v182
        %v252 = vmul.f32 %v183, %v183
        %v253 = vmul.f32 %v184, %v184
        %v254 = vmul.f32 %v185, %v185
        %v255 = vmul.f32 %v186, %v186
        %v256 = vmul.f32 %v187, %v187
        %v257 = vmul.f32 %v188, %v188
        %v258 = vadd.f32 %v226, %v227
        %v259 = vadd.f32 %v258, %v228
        %v260 = vadd.f32 %v259, %v229
        %v261 = vadd.f32 %v260, %v230
        %v262 = vadd.f32 %v261, %v231
        %v263 = vadd.f32 %v262, %v232
        %v264 = vadd.f32 %v263, %v233
        %v265 = vadd.f32 %v264, %v234
        %v266 = vadd.f32 %v265, %v235
        %v267 = vadd.f32 %v266, %v236
        %v268 = vadd.f32 %v267, %v237
        %v269 = vadd.f32 %v268, %v238
        %v270 = vadd.f32 %v269, %v239
        %v271 = vadd.f32 %v270, %v240
        %v272 = vadd.f32 %v271, %v241
        %v273 = vadd.f32 %v272, %v242
        %v274 = vadd.f32 %v273, %v243
        %v275 = vadd.f32 %v274, %v244
        %v276 = vadd.f32 %v275, %v245
        %v277 = vadd.f32 %v276, %v246
        %v278 = vadd.f32 %v277, %v247
        %v279 = vadd.f32 %v278, %v248
        %v280 = vadd.f32 %v279, %v249
        %v281 = vadd.f32 %v280, %v250
        %v282 = vadd.f32 %v281, %v251
        %v283 = vadd.f32 %v282, %v252
        %v284 = vadd.f32 %v283, %v253
        %v285 = vadd.f32 %v284, %v254
        %v286 = vadd.f32 %v285, %v255
        %v287 = vadd.f32 %v286, %v256
        %v288 = vadd.f32 %v287, %v257
        %v289 = vrot.slane %v288, 4
        %v290 = vadd.f32 %v288, %v289
        %v291 = vrot.slane %v290, 2
        %v292 = vadd.f32 %v290, %v291
        %v293 = vrot.slane %v292, 1
        %v294 = vadd.f32 %v292, %v293
        %v295 = vld [vmem:[%s150] sm:$0x3]
        %vm296 = vcmask 1040384
        %v297 = vsel %vm296, %v225, %v294
        %v298 = vadd.f32 %v295, %v297
        %299 = vst [vmem:[%s150] sm:$0x3] %v298
        %s300 = sand.u32 %s66, 1
        %s301 = scalar_lea.sflag [#allocation4], %s300
        %s302 = sand.u32 %s66, 1
        %s303 = smul.addr %s302, 2
        %s304 = scalar_lea.vmem [#allocation5], %s303
        // Predicated region
        $region33: #{tpu_custom_call.1} parent=23 // pred_check
          %p305 = pneg %p76
        $region34: #{tpu_custom_call.1} parent=23 // pred_check_branch
          %307 = sbr.rel (%p305) target = $region36
        $region35: #{tpu_custom_call.1} parent=23 // pred_region
          %s309 = ssub.s32 32, 32
          %310 = vsyncadd %s301, %s309
          %s311 = smul.addr %s22, 32
          %s312 = scalar_lea.hbm %s1, %s311
          %s314 = sshll.u32 %s304, 4
          %s315 = int_to_ptr.vmem [resolvable:$true] %s314
          %317 = dma.vmem_to_hbm [thread:$0]  %s315, 32, %s312, %s301
        $region36: #{tpu_custom_call.1} parent=23 // pred_fallthru
          _
      $region24: #{tpu_custom_call.1} parent=5 // pred_fallthru
        _
      %p318 = scmp.le.s32.totalorder 2, %s13
      // Predicated region
      $region37: #{tpu_custom_call.1} parent=5 // pred_check
        %p319 = pneg %p318
      $region38: #{tpu_custom_call.1} parent=5 // pred_check_branch
        %321 = sbr.rel (%p319) target = $region40
      $region39: #{tpu_custom_call.1} parent=5 // pred_region
        %s322 = ssub.s32 %s13, 2
        // Predicated region
        $region41: #{tpu_custom_call.1} parent=39 // pred_check
          %p323 = pneg %p82
        $region42: #{tpu_custom_call.1} parent=39 // pred_check_branch
          %325 = sbr.rel (%p323) target = $region44
        $region43: #{tpu_custom_call.1} parent=39 // pred_region
          %s326 = sand.u32 %s67, 1
          %s327 = scalar_lea.sflag [#allocation4], %s326
          %s328 = sand.u32 %s67, 1
          %s329 = smul.addr %s328, 2
          %s330 = scalar_lea.vmem [#allocation5], %s329
          %331 = dma.done %s327, 32
        $region44: #{tpu_custom_call.1} parent=39 // pred_fallthru
          _
      $region40: #{tpu_custom_call.1} parent=5 // pred_fallthru
        _
    $region6: #{tpu_custom_call.1} parent=1 // loop_footer
      %s17 = sadd.s32 1, %s13
    $region7: #{tpu_custom_call.1} parent=1 // loop_footer_branch
      %12 = sbr.rel target = $region3
    $region8: #{tpu_custom_call.1} parent=1 // loop_exit
      _
    %332 = vsyncpa [#allocation3], 1
    %s333 = scalar_lea.sflag [#allocation3], 1
    %334 = vsyncpa %s333, 1
    %335 = vsyncpa [#allocation4], 1
    %s336 = scalar_lea.sflag [#allocation4], 1
    %337 = vsyncpa %s336, 1

</llo_original>
